<compile_context>
chip_gen: v5e
topology: v5e:2x2
jax: 0.10.0
libtpu: 0.0.40
codegen_flags: <defaults>
</compile_context>

<pallas_src>
import jax
import jax.numpy as jnp
import numpy as np
from jax.experimental import pallas as pl
from jax.experimental.pallas import tpu as pltpu

LANES = 128               # lane width (last dim of the slab)
SUBLANES = 8              # f32 sublane granularity
MAX_BLOCK_ROWS = 4096     # (4096, 128) f32 block = 2 MiB per grid step
TINY_N = SUBLANES * LANES  # below this, fused XLA beats a pallas_call launch


def _cdiv(a, b):
    return -(-a // b)


def _ceil_to(x, m):
    return _cdiv(x, m) * m


def _sse_kernel(d_ref, o_ref):
    """Sum-of-squares over (block_rows, 128) diff tiles.

    The output block is one (8, 128) vreg per split; its index_map is constant
    along the reduction axis so it stays resident in VMEM and doubles as the
    accumulator (no scratch). Per step: elementwise square + per-vreg partial
    sums (pure VPU); the single tiny cross-lane reduce happens in JAX.
    """
    i = pl.program_id(1)

    @pl.when(i == 0)
    def _init():
        o_ref[...] = jnp.zeros_like(o_ref)

    d = d_ref[...].astype(jnp.float32)
    o_ref[...] += jnp.sum((d * d).reshape(-1, SUBLANES, LANES), axis=0)


def masked_mse_loss(pred, neighbor_mask, hint, *, max_block_rows=MAX_BLOCK_ROWS):
    """pred: [N, 1] float, neighbor_mask: [N] bool, hint: [K] float (K = mask.sum())."""
    N = pred.shape[0]
    K = hint.shape[0]  # static denominator (== mask.sum() by module contract)
    if K == 0:
        # PyTorch's F.mse_loss over an empty selection returns NaN.
        return jnp.float32(jnp.nan)
    inv_k = 1.0 / float(K)
    # TODO(synk): the contract hint.shape[0] == neighbor_mask.sum() cannot be
    # verified on traced inputs; a mismatch silently reuses hint[K-1].

    # --- glue (plain JAX, fused by XLA): scatter the compact hint back to node
    #     slots and fold mask + subtraction so ONE f32 stream reaches the
    #     kernel. Padded tail is zero -> zero residual contribution. ----------
    pos = jnp.cumsum(neighbor_mask.astype(jnp.int32)) - 1
    hint_at_node = jnp.take(hint.astype(jnp.float32), jnp.clip(pos, 0, K - 1))
    diff = jnp.where(
        neighbor_mask,
        pred[:, 0].astype(jnp.float32) - hint_at_node,
        jnp.float32(0.0),
    )

    # --- tiny-N bypass: pallas_call launch + padded HBM slab costs more than
    #     the whole computation; XLA fuses scatter+diff+reduce in one pass. ---
    if N <= TINY_N:
        return jnp.sum(diff * diff) * jnp.float32(inv_k)

    # --- tight, lane-dense (rows_pad, 128) slab sizing -----------------------
    rows = _cdiv(N, LANES)
    rows8 = max(SUBLANES, _ceil_to(rows, SUBLANES))
    if rows8 <= max_block_rows:
        n_blocks, block_rows = 1, rows8
    else:
        n_blocks = _cdiv(rows8, max_block_rows)
        block_rows = _ceil_to(_cdiv(rows8, n_blocks), SUBLANES)

    # Split row-blocks across TensorCores when there are enough of them
    # (v7x has 2 TCs with per-TC HBM bandwidth; 1-TC chips just loop).
    n_split = 2 if n_blocks >= 4 else 1
    blocks_per_split = _cdiv(n_blocks, n_split)
    n_blocks = n_split * blocks_per_split
    rows_pad = n_blocks * block_rows

    diff2d = jnp.pad(diff, (0, rows_pad * LANES - N)).reshape(rows_pad, LANES)

    partial = pl.pallas_call(
        _sse_kernel,
        out_shape=jax.ShapeDtypeStruct((n_split * SUBLANES, LANES), jnp.float32),
        grid_spec=pltpu.PrefetchScalarGridSpec(
            num_scalar_prefetch=0,
            grid=(n_split, blocks_per_split),
            in_specs=[
                pl.BlockSpec(
                    (block_rows, LANES),
                    lambda c, i: (c * blocks_per_split + i, 0),
                ),
            ],
            out_specs=pl.BlockSpec((SUBLANES, LANES), lambda c, i: (c, 0)),
        ),
        compiler_params=pltpu.CompilerParams(
            dimension_semantics=("parallel", "arbitrary"),
        ),
    )(diff2d)

    # Tiny finalize on <= 8 KiB: cross-core partial sum, scalar reduce, scale.
    return jnp.sum(partial) * jnp.float32(inv_k)


def _make_mask(key, n, k):
    perm = np.asarray(jax.random.permutation(key, n))
    mask = np.zeros((n,), dtype=bool)
    mask[np.sort(perm[:k])] = True
    return mask


def _numpy_ref(pred, mask, hint):
    preds_sel = np.asarray(pred)[mask].squeeze(axis=1).astype(np.float64)
    return np.mean((preds_sel - np.asarray(hint).astype(np.float64)) ** 2)


if __name__ == "__main__":
    key = jax.random.PRNGKey(0)
    k_pred, k_mask, k_hint, k_pred2, k_mask2, k_hint2 = jax.random.split(key, 6)

    # --- case 1: the shipped small case (tiny-N fused-XLA bypass) ------------
    N1, K1 = 64, 24
    pred1 = jax.random.normal(k_pred, (N1, 1), dtype=jnp.float32)
    mask1_np = _make_mask(k_mask, N1, K1)
    hint1 = jax.random.normal(k_hint, (K1,), dtype=jnp.float32)

    loss1 = jax.block_until_ready(masked_mse_loss(pred1, jnp.asarray(mask1_np), hint1))
    ref1 = _numpy_ref(pred1, mask1_np, hint1)
    assert np.allclose(np.asarray(loss1), ref1, rtol=1e-5, atol=1e-6), (loss1, ref1)

    # --- case 2: larger input, single-block Pallas path -----------------------
    N2, K2 = 70000, 31337
    pred2 = jax.random.normal(k_pred2, (N2, 1), dtype=jnp.float32)
    mask2_np = _make_mask(k_mask2, N2, K2)
    hint2 = jax.random.normal(k_hint2, (K2,), dtype=jnp.float32)

    loss2 = jax.block_until_ready(masked_mse_loss(pred2, jnp.asarray(mask2_np), hint2))
    ref2 = _numpy_ref(pred2, mask2_np, hint2)
    assert np.allclose(np.asarray(loss2), ref2, rtol=1e-4, atol=1e-5), (loss2, ref2)

    # --- case 3: same data, small max_block_rows to exercise the tiled,
    #     dual-split (parallel x arbitrary) reduction path ---------------------
    loss3 = jax.block_until_ready(
        masked_mse_loss(pred2, jnp.asarray(mask2_np), hint2, max_block_rows=128)
    )
    assert np.allclose(np.asarray(loss3), ref2, rtol=1e-4, atol=1e-5), (loss3, ref2)

    print("KERNEL_OK")
</pallas_src>

<mosaic_0001>
module attributes {stable_mosaic.version = 11 : i64} {
  func.func @_sse_kernel(%arg0: i32, %arg1: i32, %arg2: memref<552x128xf32, #tpu.memory_space<vmem>>, %arg3: memref<8x128xf32, #tpu.memory_space<vmem>>) attributes {dimension_semantics = [#tpu.dimension_semantics<parallel>, #tpu.dimension_semantics<arbitrary>], iteration_bounds = array<i64: 1, 1>, scalar_prefetch = 0 : i64, scratch_operands = 0 : i64, tpu.core_type = #tpu.core_type<tc>, window_params = [{transform_indices = @transform_0, window_bounds = array<i64: 552, 128>}, {transform_indices = @transform_1, window_bounds = array<i64: 8, 128>}]} {
    %c0_i32 = arith.constant 0 : i32
    %0 = arith.cmpi eq, %arg1, %c0_i32 : i32
    %1 = arith.extui %0 : i1 to i32
    %c0_i32_0 = arith.constant 0 : i32
    %2 = arith.cmpi ne, %1, %c0_i32_0 : i32
    scf.if %2 {
      %cst_6 = arith.constant 0.000000e+00 : f32
      %10 = vector.broadcast %cst_6 : f32 to vector<8x128xf32>
      %c0_7 = arith.constant 0 : index
      %c0_8 = arith.constant 0 : index
      %11 = vector.load %arg3[%c0_7, %c0_8] : memref<8x128xf32, #tpu.memory_space<vmem>>, vector<8x128xf32>
      tpu.vector_store %arg3[%c0_7, %c0_8], %10 {strides = array<i32>} : memref<8x128xf32, #tpu.memory_space<vmem>>, vector<8x128xf32>,
    } else {
    }
    %c0 = arith.constant 0 : index
    %c0_1 = arith.constant 0 : index
    %3 = vector.load %arg2[%c0, %c0_1] : memref<552x128xf32, #tpu.memory_space<vmem>>, vector<552x128xf32>
    %c0_2 = arith.constant 0 : index
    %c0_3 = arith.constant 0 : index
    %4 = vector.load %arg3[%c0_2, %c0_3] : memref<8x128xf32, #tpu.memory_space<vmem>>, vector<8x128xf32>
    %5 = arith.mulf %3, %3 : vector<552x128xf32>
    %6 = vector.shape_cast %5 : vector<552x128xf32> to vector<69x8x128xf32>
    %cst = arith.constant dense<0.000000e+00> : vector<8x128xf32>
    %7 = vector.multi_reduction <add>, %6, %cst [0] : vector<69x8x128xf32> to vector<8x128xf32>
    %8 = arith.addf %4, %7 : vector<8x128xf32>
    %c0_4 = arith.constant 0 : index
    %c0_5 = arith.constant 0 : index
    %9 = vector.load %arg3[%c0_4, %c0_5] : memref<8x128xf32, #tpu.memory_space<vmem>>, vector<8x128xf32>
    tpu.vector_store %arg3[%c0_4, %c0_5], %8 {strides = array<i32>} : memref<8x128xf32, #tpu.memory_space<vmem>>, vector<8x128xf32>,
    return
  }
  func.func @transform_0(%arg0: i32, %arg1: i32) -> (i32, i32) {
    %c1_i32 = arith.constant 1 : i32
    %0 = arith.muli %arg0, %c1_i32 : i32
    %1 = arith.addi %0, %arg1 : i32
    %c0_i32 = arith.constant 0 : i32
    %c0_i32_0 = arith.constant 0 : i32
    return %1, %c0_i32 : i32, i32
  }
  func.func @transform_1(%arg0: i32, %arg1: i32) -> (i32, i32) {
    %c0_i32 = arith.constant 0 : i32
    %c0_i32_0 = arith.constant 0 : i32
    return %arg0, %c0_i32 : i32, i32
  }
}

</mosaic_0001>

<llo_original>
// kernel: tpu_custom_call.1
$region0: #{tpu_custom_call.1}
  #allocation0 [shape = 'u32[]', space=smem, size = 0x4, offset = 0x4, fixed_abs, tag = 'smem constant byte address 0x4 - core index']
  #allocation1 [shape = 'u32[72,128]{1,0:T(1,128)}', space=vmem, size = 0x9000, scoped, tag = 'internal scratch']
  %s0 = inlined_call_operand.hbm [shape: f32[552,128], index: 0, kind: input, shape index: {}]
  %s1 = inlined_call_operand.hbm [shape: f32[8,128], index: 1, kind: output, shape index: {}]
  %s2 = sld [smem:[#allocation0]]
  $region22: #{tpu_custom_call.1} parent=0
    _
  %s4 = ssub.s32 1, %s2
  %s5 = scalar_select 0, %s4, %s2
  $region1: #{tpu_custom_call.1} parent=0
    #allocation2 [shape = 'u8[282624]{0}', space=vmem, size = 0x45000, scoped, tag = 'input window, operand 0, single buffered']
    #allocation3 [shape = 's32[1]{0}', space=sflag, size = 0x4, scoped, tag = 'scoped memory for tpu_custom_call.1']
    #allocation4 [shape = 's32[1]{0}', space=sflag, size = 0x4, scoped, tag = 'scoped memory for tpu_custom_call.1']
    #allocation5 [shape = 'u8[4096]{0}', space=vmem, size = 0x1000, scoped, tag = 'output window, operand 0, single buffered']
    %6 = vsyncpa [#allocation3], 0
    %7 = vsyncpa [#allocation4], 0
    // Predicated region
    $region2: #{tpu_custom_call.1} parent=1 // pred_check
      _
    $region3: #{tpu_custom_call.1} parent=1 // pred_check_branch
      %9 = sbr.rel (0) target = $region5
    $region4: #{tpu_custom_call.1} parent=1 // pred_region
      %s10 = sadd.s32 0, 0
      %s11 = smul.u32 69, %s10
      %13 = vsyncadd [#allocation3], 0
      %s14 = smul.addr %s11, 8
      %s15 = scalar_lea.hbm %s0, %s14
      %s16 = sshll.u32 %s15, 4
      %s17 = int_to_ptr.hbm [resolvable:$true] %s16
      %s18 = sshll.u32 [#allocation2], 4
      %s19 = int_to_ptr.vmem [resolvable:$true] %s18
      %24 = dma.hbm_to_vmem [thread:$0]  %s17, 8832, %s19, [#allocation3], 128, 128, 8
    $region5: #{tpu_custom_call.1} parent=1 // pred_fallthru
      _
    // Predicated region
    $region6: #{tpu_custom_call.1} parent=1 // pred_check
      _
    $region7: #{tpu_custom_call.1} parent=1 // pred_check_branch
      %26 = sbr.rel (0) target = $region9
    $region8: #{tpu_custom_call.1} parent=1 // pred_region
      %28 = dma.done [#allocation3], 8832
    $region9: #{tpu_custom_call.1} parent=1 // pred_fallthru
      _
    %s29 = sadd.s32 0, 0
    %s30 = smul.u32 69, %s29
    %p31 = scmp.eq.s32.totalorder 0, 0
    // Predicated region
    $region10: #{tpu_custom_call.1} parent=1 // pred_check
      %p32 = pneg %p31
    $region11: #{tpu_custom_call.1} parent=1 // pred_check_branch
      %34 = sbr.rel (%p32) target = $region13
    $region12: #{tpu_custom_call.1} parent=1 // pred_region
      %35 = vst [vmem:[#allocation5] sm:$0xff] 0.0
    $region13: #{tpu_custom_call.1} parent=1 // pred_fallthru
      _
    %v36 = vld [vmem:[#allocation2] sm:$0xff]
    %v37 = vld [vmem:[#allocation2 + $0x8] sm:$0xff]
    %v38 = vld [vmem:[#allocation2 + $0x10] sm:$0xff]
    %v39 = vld [vmem:[#allocation2 + $0x18] sm:$0xff]
    %v40 = vld [vmem:[#allocation2 + $0x20] sm:$0xff]
    %v41 = vld [vmem:[#allocation2 + $0x28] sm:$0xff]
    %v42 = vld [vmem:[#allocation2 + $0x30] sm:$0xff]
    %v43 = vld [vmem:[#allocation2 + $0x38] sm:$0xff]
    %v44 = vld [vmem:[#allocation2 + $0x40] sm:$0xff]
    %v45 = vld [vmem:[#allocation2 + $0x48] sm:$0xff]
    %v46 = vld [vmem:[#allocation2 + $0x50] sm:$0xff]
    %v47 = vld [vmem:[#allocation2 + $0x58] sm:$0xff]
    %v48 = vld [vmem:[#allocation2 + $0x60] sm:$0xff]
    %v49 = vld [vmem:[#allocation2 + $0x68] sm:$0xff]
    %v50 = vld [vmem:[#allocation2 + $0x70] sm:$0xff]
    %v51 = vld [vmem:[#allocation2 + $0x78] sm:$0xff]
    %v52 = vld [vmem:[#allocation2 + $0x80] sm:$0xff]
    %v53 = vld [vmem:[#allocation2 + $0x88] sm:$0xff]
    %v54 = vld [vmem:[#allocation2 + $0x90] sm:$0xff]
    %v55 = vld [vmem:[#allocation2 + $0x98] sm:$0xff]
    %v56 = vld [vmem:[#allocation2 + $0xa0] sm:$0xff]
    %v57 = vld [vmem:[#allocation2 + $0xa8] sm:$0xff]
    %v58 = vld [vmem:[#allocation2 + $0xb0] sm:$0xff]
    %v59 = vld [vmem:[#allocation2 + $0xb8] sm:$0xff]
    %v60 = vld [vmem:[#allocation2 + $0xc0] sm:$0xff]
    %v61 = vld [vmem:[#allocation2 + $0xc8] sm:$0xff]
    %v62 = vld [vmem:[#allocation2 + $0xd0] sm:$0xff]
    %v63 = vld [vmem:[#allocation2 + $0xd8] sm:$0xff]
    %v64 = vld [vmem:[#allocation2 + $0xe0] sm:$0xff]
    %v65 = vld [vmem:[#allocation2 + $0xe8] sm:$0xff]
    %v66 = vld [vmem:[#allocation2 + $0xf0] sm:$0xff]
    %v67 = vld [vmem:[#allocation2 + $0xf8] sm:$0xff]
    %v68 = vld [vmem:[#allocation2 + $0x100] sm:$0xff]
    %v69 = vld [vmem:[#allocation2 + $0x108] sm:$0xff]
    %v70 = vld [vmem:[#allocation2 + $0x110] sm:$0xff]
    %v71 = vld [vmem:[#allocation2 + $0x118] sm:$0xff]
    %v72 = vld [vmem:[#allocation2 + $0x120] sm:$0xff]
    %v73 = vld [vmem:[#allocation2 + $0x128] sm:$0xff]
    %v74 = vld [vmem:[#allocation2 + $0x130] sm:$0xff]
    %v75 = vld [vmem:[#allocation2 + $0x138] sm:$0xff]
    %v76 = vld [vmem:[#allocation2 + $0x140] sm:$0xff]
    %v77 = vld [vmem:[#allocation2 + $0x148] sm:$0xff]
    %v78 = vld [vmem:[#allocation2 + $0x150] sm:$0xff]
    %v79 = vld [vmem:[#allocation2 + $0x158] sm:$0xff]
    %v80 = vld [vmem:[#allocation2 + $0x160] sm:$0xff]
    %v81 = vld [vmem:[#allocation2 + $0x168] sm:$0xff]
    %v82 = vld [vmem:[#allocation2 + $0x170] sm:$0xff]
    %v83 = vld [vmem:[#allocation2 + $0x178] sm:$0xff]
    %v84 = vld [vmem:[#allocation2 + $0x180] sm:$0xff]
    %v85 = vld [vmem:[#allocation2 + $0x188] sm:$0xff]
    %v86 = vld [vmem:[#allocation2 + $0x190] sm:$0xff]
    %v87 = vld [vmem:[#allocation2 + $0x198] sm:$0xff]
    %v88 = vld [vmem:[#allocation2 + $0x1a0] sm:$0xff]
    %v89 = vld [vmem:[#allocation2 + $0x1a8] sm:$0xff]
    %v90 = vld [vmem:[#allocation2 + $0x1b0] sm:$0xff]
    %v91 = vld [vmem:[#allocation2 + $0x1b8] sm:$0xff]
    %v92 = vld [vmem:[#allocation2 + $0x1c0] sm:$0xff]
    %v93 = vld [vmem:[#allocation2 + $0x1c8] sm:$0xff]
    %v94 = vld [vmem:[#allocation2 + $0x1d0] sm:$0xff]
    %v95 = vld [vmem:[#allocation2 + $0x1d8] sm:$0xff]
    %v96 = vld [vmem:[#allocation2 + $0x1e0] sm:$0xff]
    %v97 = vld [vmem:[#allocation2 + $0x1e8] sm:$0xff]
    %v98 = vld [vmem:[#allocation2 + $0x1f0] sm:$0xff]
    %v99 = vld [vmem:[#allocation2 + $0x1f8] sm:$0xff]
    %v100 = vld [vmem:[#allocation2 + $0x200] sm:$0xff]
    %v101 = vld [vmem:[#allocation2 + $0x208] sm:$0xff]
    %v102 = vld [vmem:[#allocation2 + $0x210] sm:$0xff]
    %v103 = vld [vmem:[#allocation2 + $0x218] sm:$0xff]
    %v104 = vld [vmem:[#allocation2 + $0x220] sm:$0xff]
    %v105 = vld [vmem:[#allocation5] sm:$0xff]
    %v106 = vmul.f32 %v36, %v36
    %v107 = vmul.f32 %v37, %v37
    %v108 = vmul.f32 %v38, %v38
    %v109 = vmul.f32 %v39, %v39
    %v110 = vmul.f32 %v40, %v40
    %v111 = vmul.f32 %v41, %v41
    %v112 = vmul.f32 %v42, %v42
    %v113 = vmul.f32 %v43, %v43
    %v114 = vmul.f32 %v44, %v44
    %v115 = vmul.f32 %v45, %v45
    %v116 = vmul.f32 %v46, %v46
    %v117 = vmul.f32 %v47, %v47
    %v118 = vmul.f32 %v48, %v48
    %v119 = vmul.f32 %v49, %v49
    %v120 = vmul.f32 %v50, %v50
    %v121 = vmul.f32 %v51, %v51
    %v122 = vmul.f32 %v52, %v52
    %v123 = vmul.f32 %v53, %v53
    %v124 = vmul.f32 %v54, %v54
    %v125 = vmul.f32 %v55, %v55
    %v126 = vmul.f32 %v56, %v56
    %v127 = vmul.f32 %v57, %v57
    %v128 = vmul.f32 %v58, %v58
    %v129 = vmul.f32 %v59, %v59
    %v130 = vmul.f32 %v60, %v60
    %v131 = vmul.f32 %v61, %v61
    %v132 = vmul.f32 %v62, %v62
    %v133 = vmul.f32 %v63, %v63
    %v134 = vmul.f32 %v64, %v64
    %v135 = vmul.f32 %v65, %v65
    %v136 = vmul.f32 %v66, %v66
    %v137 = vmul.f32 %v67, %v67
    %v138 = vmul.f32 %v68, %v68
    %v139 = vmul.f32 %v69, %v69
    %v140 = vmul.f32 %v70, %v70
    %v141 = vmul.f32 %v71, %v71
    %v142 = vmul.f32 %v72, %v72
    %v143 = vmul.f32 %v73, %v73
    %v144 = vmul.f32 %v74, %v74
    %v145 = vmul.f32 %v75, %v75
    %v146 = vmul.f32 %v76, %v76
    %v147 = vmul.f32 %v77, %v77
    %v148 = vmul.f32 %v78, %v78
    %v149 = vmul.f32 %v79, %v79
    %v150 = vmul.f32 %v80, %v80
    %v151 = vmul.f32 %v81, %v81
    %v152 = vmul.f32 %v82, %v82
    %v153 = vmul.f32 %v83, %v83
    %v154 = vmul.f32 %v84, %v84
    %v155 = vmul.f32 %v85, %v85
    %v156 = vmul.f32 %v86, %v86
    %v157 = vmul.f32 %v87, %v87
    %v158 = vmul.f32 %v88, %v88
    %v159 = vmul.f32 %v89, %v89
    %v160 = vmul.f32 %v90, %v90
    %v161 = vmul.f32 %v91, %v91
    %v162 = vmul.f32 %v92, %v92
    %v163 = vmul.f32 %v93, %v93
    %v164 = vmul.f32 %v94, %v94
    %v165 = vmul.f32 %v95, %v95
    %v166 = vmul.f32 %v96, %v96
    %v167 = vmul.f32 %v97, %v97
    %v168 = vmul.f32 %v98, %v98
    %v169 = vmul.f32 %v99, %v99
    %v170 = vmul.f32 %v100, %v100
    %v171 = vmul.f32 %v101, %v101
    %v172 = vmul.f32 %v102, %v102
    %v173 = vmul.f32 %v103, %v103
    %v174 = vmul.f32 %v104, %v104
    %v175 = vadd.f32 %v106, %v107
    %v176 = vadd.f32 %v175, %v108
    %v177 = vadd.f32 %v176, %v109
    %v178 = vadd.f32 %v177, %v110
    %v179 = vadd.f32 %v178, %v111
    %v180 = vadd.f32 %v179, %v112
    %v181 = vadd.f32 %v180, %v113
    %v182 = vadd.f32 %v181, %v114
    %v183 = vadd.f32 %v182, %v115
    %v184 = vadd.f32 %v183, %v116
    %v185 = vadd.f32 %v184, %v117
    %v186 = vadd.f32 %v185, %v118
    %v187 = vadd.f32 %v186, %v119
    %v188 = vadd.f32 %v187, %v120
    %v189 = vadd.f32 %v188, %v121
    %v190 = vadd.f32 %v189, %v122
    %v191 = vadd.f32 %v190, %v123
    %v192 = vadd.f32 %v191, %v124
    %v193 = vadd.f32 %v192, %v125
    %v194 = vadd.f32 %v193, %v126
    %v195 = vadd.f32 %v194, %v127
    %v196 = vadd.f32 %v195, %v128
    %v197 = vadd.f32 %v196, %v129
    %v198 = vadd.f32 %v197, %v130
    %v199 = vadd.f32 %v198, %v131
    %v200 = vadd.f32 %v199, %v132
    %v201 = vadd.f32 %v200, %v133
    %v202 = vadd.f32 %v201, %v134
    %v203 = vadd.f32 %v202, %v135
    %v204 = vadd.f32 %v203, %v136
    %v205 = vadd.f32 %v204, %v137
    %v206 = vadd.f32 %v205, %v138
    %v207 = vadd.f32 %v206, %v139
    %v208 = vadd.f32 %v207, %v140
    %v209 = vadd.f32 %v208, %v141
    %v210 = vadd.f32 %v209, %v142
    %v211 = vadd.f32 %v210, %v143
    %v212 = vadd.f32 %v211, %v144
    %v213 = vadd.f32 %v212, %v145
    %v214 = vadd.f32 %v213, %v146
    %v215 = vadd.f32 %v214, %v147
    %v216 = vadd.f32 %v215, %v148
    %v217 = vadd.f32 %v216, %v149
    %v218 = vadd.f32 %v217, %v150
    %v219 = vadd.f32 %v218, %v151
    %v220 = vadd.f32 %v219, %v152
    %v221 = vadd.f32 %v220, %v153
    %v222 = vadd.f32 %v221, %v154
    %v223 = vadd.f32 %v222, %v155
    %v224 = vadd.f32 %v223, %v156
    %v225 = vadd.f32 %v224, %v157
    %v226 = vadd.f32 %v225, %v158
    %v227 = vadd.f32 %v226, %v159
    %v228 = vadd.f32 %v227, %v160
    %v229 = vadd.f32 %v228, %v161
    %v230 = vadd.f32 %v229, %v162
    %v231 = vadd.f32 %v230, %v163
    %v232 = vadd.f32 %v231, %v164
    %v233 = vadd.f32 %v232, %v165
    %v234 = vadd.f32 %v233, %v166
    %v235 = vadd.f32 %v234, %v167
    %v236 = vadd.f32 %v235, %v168
    %v237 = vadd.f32 %v236, %v169
    %v238 = vadd.f32 %v237, %v170
    %v239 = vadd.f32 %v238, %v171
    %v240 = vadd.f32 %v239, %v172
    %v241 = vadd.f32 %v240, %v173
    %v242 = vadd.f32 %v241, %v174
    %v243 = vadd.f32 %v105, %v242
    %244 = vst [vmem:[#allocation5] sm:$0xff] %v243
    // Predicated region
    $region14: #{tpu_custom_call.1} parent=1 // pred_check
      _
    $region15: #{tpu_custom_call.1} parent=1 // pred_check_branch
      %246 = sbr.rel (0) target = $region17
    $region16: #{tpu_custom_call.1} parent=1 // pred_region
      %248 = vsyncadd [#allocation4], 0
      %s250 = sshll.u32 [#allocation5], 4
      %s251 = int_to_ptr.vmem [resolvable:$true] %s250
      %s252 = sshll.u32 %s1, 4
      %s253 = int_to_ptr.hbm [resolvable:$true] %s252
      %255 = dma.vmem_to_hbm [thread:$0]  %s251, 128, %s253, [#allocation4]
    $region17: #{tpu_custom_call.1} parent=1 // pred_fallthru
      _
    // Predicated region
    $region18: #{tpu_custom_call.1} parent=1 // pred_check
      _
    $region19: #{tpu_custom_call.1} parent=1 // pred_check_branch
      %257 = sbr.rel (0) target = $region21
    $region20: #{tpu_custom_call.1} parent=1 // pred_region
      %259 = dma.done [#allocation4], 128
    $region21: #{tpu_custom_call.1} parent=1 // pred_fallthru
      _
    %260 = vsyncpa [#allocation3], 1
    %261 = vsyncpa [#allocation4], 1

</llo_original>
